<compile_context>
chip_gen: v7x
topology: tpu7x:2x2x1
jax: 0.10.0
libtpu: 0.0.40
codegen_flags: <defaults>
</compile_context>

<pallas_src>
import functools

import jax
import jax.numpy as jnp
from jax.experimental import pallas as pl
from jax.experimental.pallas import tpu as pltpu


def _round_up(x, m):
    return ((x + m - 1) // m) * m


# VMEM sizing: conservative enough for v7x (64 MiB per TC); plenty of headroom
# on v5e/v6e (128 MiB).
_VMEM_LIMIT_BYTES = 48 * 1024 * 1024      # scoped-VMEM limit requested
_VMEM_TILE_BUDGET = 36 * 1024 * 1024      # what our buffers may use (compiler headroom)
_W_RESIDENT_MAX_BYTES = 8 * 1024 * 1024   # W kept VMEM-resident when <= this
                                          # (double-buffered by Pallas => <=16 MiB)


# ----------------------------- Pallas kernels -------------------------------

def _silly_linear_resident_kernel(x_ref, wt_ref, b_ref, o_ref, *, cast_dtype):
    """W is fully VMEM-resident: one dot per M-block, bias add, store."""
    x = x_ref[...]
    if cast_dtype is not None:
        # In-kernel operand cast (VPU, hidden under the MXU); avoids a separate
        # HBM round trip over x in the wrapper.
        x = x.astype(cast_dtype)
    acc = jnp.dot(x, wt_ref[...], preferred_element_type=jnp.float32)
    o_ref[...] = (acc + b_ref[...]).astype(o_ref.dtype)


def _silly_linear_tiled_kernel(x_ref, wt_ref, b_ref, o_ref, acc_ref,
                               *, k_valid, tk, cast_dtype):
    """3-D tiled matmul with f32 VMEM accumulator and bias epilogue."""
    k = pl.program_id(2)

    @pl.when(k == 0)
    def _init():
        acc_ref[...] = jnp.zeros_like(acc_ref)

    x = x_ref[...]
    w = wt_ref[...]
    if k_valid is not None:
        # K is not a multiple of tk: the last K block is partial and its tail
        # (in both operands) is undefined VMEM. Zero it so garbage (possibly
        # NaN bit patterns) cannot leak into the accumulation. VPU work only,
        # hidden under the MXU.
        k0 = k * tk
        col = jax.lax.broadcasted_iota(jnp.int32, x.shape, 1) + k0
        x = jnp.where(col < k_valid, x, 0)
        row = jax.lax.broadcasted_iota(jnp.int32, w.shape, 0) + k0
        w = jnp.where(row < k_valid, w, 0)
    if cast_dtype is not None:
        x = x.astype(cast_dtype)   # in-kernel cast; no extra HBM pass over x

    acc_ref[...] += jnp.dot(x, w, preferred_element_type=jnp.float32)

    @pl.when(k == pl.num_programs(2) - 1)
    def _epilogue():
        # Bias add once per output tile, in f32; cast only at the final store.
        o_ref[...] = (acc_ref[...] + b_ref[...]).astype(o_ref.dtype)


# ------------------------------- wrapper -------------------------------------

def prepare_silly_linear(weight, bias, compute_dtype=None):
    """Pre-transpose and lane-pad the frozen weight/bias ONCE (not per call).

    weight: (out_features, in_features); bias: (out_features,) or None.
    Returns (wt, bias_pad, out_features) where
      wt:       (in_features, n_pad), n_pad = round_up(out_features, 256)
                (256-multiple so the 2x256^2 MXU on v6e/v7x is fully used),
                zero-padded columns, optionally cast to `compute_dtype`
                (bf16 is worthwhile on v5e/v6e/v7x alike: bf16-native MXU and
                 half the weight-streaming bytes).
      bias_pad: (1, n_pad) float32 (bias stays f32 inside the kernel).
    """
    out_features, in_features = weight.shape
    n_pad = _round_up(out_features, 256)
    wt_dtype = compute_dtype if compute_dtype is not None else weight.dtype
    wt = jnp.zeros((in_features, n_pad), dtype=wt_dtype)
    wt = wt.at[:, :out_features].set(weight.T.astype(wt_dtype))
    bias_pad = jnp.zeros((1, n_pad), dtype=jnp.float32)
    if bias is not None:
        bias_pad = bias_pad.at[0, :out_features].set(bias.astype(jnp.float32))
    return wt, bias_pad, out_features


def silly_linear(x, wt, bias_pad, out_features, *,
                 tm=512, tn=1024, tk=512, force_tiled=False):
    """Pallas implementation of F.linear(x, weight, bias).

    x:        (*, in_features), f32 or bf16 (cast to wt.dtype in-kernel if needed)
    wt:       (in_features, n_pad) pre-transposed, lane-padded weight
    bias_pad: (1, n_pad) float32
    returns   (*, out_features), dtype of x
    """
    K, n_pad = wt.shape
    assert x.shape[-1] == K
    lead_shape = x.shape[:-1]
    out_dtype = x.dtype

    # No dtype cast here: pre-casting x is a separate un-hidden XLA pass
    # (extra HBM round trip); the kernel casts per-tile instead.
    x2 = x.reshape(-1, K)
    M = x2.shape[0]

    xb = x2.dtype.itemsize
    wb = wt.dtype.itemsize
    ob = jnp.dtype(out_dtype).itemsize
    cast_dtype = wt.dtype if wt.dtype != x2.dtype else None

    cost = pl.CostEstimate(
        flops=2 * M * n_pad * K,
        transcendentals=0,
        bytes_accessed=M * K * xb + K * n_pad * wb + M * n_pad * ob + n_pad * 4)

    w_bytes = K * n_pad * wb
    resident = (not force_tiled) and (w_bytes <= _W_RESIDENT_MAX_BYTES)

    if resident:
        # ---- resident-W path: W DMA'd once (constant block index), grid over M only ----
        base = 2 * w_bytes + 2 * n_pad * 4   # double-buffered W + bias

        def fits(tm_c):
            return (base + 2 * tm_c * K * xb + 2 * tm_c * n_pad * ob
                    + tm_c * n_pad * 4) <= _VMEM_TILE_BUDGET

        tm_eff = 8
        for cand in (tm, 512, 256, 128, 64, 32, 16, 8):
            c = min(_round_up(M, 8), _round_up(cand, 8))
            if fits(c):
                tm_eff = c
                break

        grid = (pl.cdiv(M, tm_eff),)
        kernel = functools.partial(_silly_linear_resident_kernel,
                                   cast_dtype=cast_dtype)
        out = pl.pallas_call(
            kernel,
            out_shape=jax.ShapeDtypeStruct((M, n_pad), out_dtype),
            grid_spec=pltpu.PrefetchScalarGridSpec(
                num_scalar_prefetch=0,
                grid=grid,
                in_specs=[
                    pl.BlockSpec((tm_eff, K), lambda i: (i, 0)),   # x rows
                    pl.BlockSpec((K, n_pad), lambda i: (0, 0)),    # full W, fetched once
                    pl.BlockSpec((1, n_pad), lambda i: (0, 0)),    # bias (f32)
                ],
                out_specs=pl.BlockSpec((tm_eff, n_pad), lambda i: (i, 0)),
            ),
            compiler_params=pltpu.CompilerParams(
                dimension_semantics=("parallel",),
                vmem_limit_bytes=_VMEM_LIMIT_BYTES),
            cost_estimate=cost,
        )(x2, wt, bias_pad)
    else:
        # ---- 3-D tiled path: grid = (M/tm, n_pad/tn, ceil(K/tk)) ----
        # N tile: n_pad is a 256-multiple by construction -> lane-dense stores,
        # full MXU width; pick the largest candidate that divides n_pad.
        tn_eff = 256
        for cand in (tn, 1024, 512, 256):
            if 256 <= cand <= n_pad and n_pad % cand == 0:
                tn_eff = cand
                break
        # K tile: 256-multiples for MXU cadence; arbitrary K handled by masking
        # the partial last K block in-kernel.
        if K < 256:
            tk_eff = K
        else:
            tk_eff = 256
            for cand in (tk, 512, 256):
                if 256 <= cand <= K and cand % 256 == 0:
                    tk_eff = cand
                    break
        k_valid = K if K % tk_eff != 0 else None

        def fits(tm_c, tn_c):
            return (2 * tm_c * tk_eff * xb + 2 * tk_eff * tn_c * wb
                    + 2 * tm_c * tn_c * ob + tm_c * tn_c * 4
                    + 2 * tn_c * 4) <= _VMEM_TILE_BUDGET

        tm_eff = 8
        for cand in (tm, 512, 256, 128, 64, 32, 16, 8):
            c = min(_round_up(M, 8), _round_up(cand, 8))
            if fits(c, tn_eff):
                tm_eff = c
                break
        while not fits(tm_eff, tn_eff) and tn_eff > 256:
            tn_eff //= 2

        grid = (pl.cdiv(M, tm_eff), n_pad // tn_eff, pl.cdiv(K, tk_eff))
        kernel = functools.partial(_silly_linear_tiled_kernel,
                                   k_valid=k_valid, tk=tk_eff,
                                   cast_dtype=cast_dtype)
        out = pl.pallas_call(
            kernel,
            out_shape=jax.ShapeDtypeStruct((M, n_pad), out_dtype),
            grid_spec=pltpu.PrefetchScalarGridSpec(
                num_scalar_prefetch=0,
                grid=grid,
                in_specs=[
                    pl.BlockSpec((tm_eff, tk_eff), lambda i, j, k: (i, k)),  # x
                    pl.BlockSpec((tk_eff, tn_eff), lambda i, j, k: (k, j)),  # W^T
                    pl.BlockSpec((1, tn_eff), lambda i, j, k: (0, j)),       # bias
                ],
                out_specs=pl.BlockSpec((tm_eff, tn_eff), lambda i, j, k: (i, j)),
                scratch_shapes=[pltpu.VMEM((tm_eff, tn_eff), jnp.float32)],
            ),
            compiler_params=pltpu.CompilerParams(
                dimension_semantics=("parallel", "parallel", "arbitrary"),
                vmem_limit_bytes=_VMEM_LIMIT_BYTES),
            cost_estimate=cost,
        )(x2, wt, bias_pad)

    # Partial last M block: undefined rows in the x tile only produce OOB output
    # rows, which Pallas masks on store; rows are independent so this is safe.
    # TODO(synk): for heavily padded out_features this slice is an extra HBM copy;
    # downstream consumers that tolerate padded N (or a plain XLA dot for tiny
    # layers) could skip it.
    if n_pad != out_features:
        out = out[:, :out_features]
    return out.reshape(*lead_shape, out_features)


# -------------------- deterministic parameter construction ------------------

def make_silly_linear_params(in_features, out_features, int_dim, seed,
                             dtype=jnp.float32):
    """Materialize weight/bias the 'RandumbTensor' way: a frozen random basis
    (keyed on `seed`) contracted with a trainable coefficient vector."""
    ckey = jax.random.PRNGKey(0)
    k_wc, k_bc = jax.random.split(ckey)
    weight_coef = jax.random.normal(k_wc, (int_dim,), dtype=dtype)
    bias_coef = jax.random.normal(k_bc, (int_dim,), dtype=dtype)

    # TODO(synk): exact CreateRandumbTensor noise generation (torch RNG stream)
    # is not reproducible in JAX; a deterministic jax.random basis keyed on
    # `seed` / `seed + 1` preserves the low-intrinsic-dim structure.
    w_basis = jax.random.normal(jax.random.PRNGKey(seed),
                                (int_dim, out_features, in_features), dtype=dtype)
    b_basis = jax.random.normal(jax.random.PRNGKey(seed + 1),
                                (int_dim, out_features), dtype=dtype)

    weight = jnp.tensordot(weight_coef, w_basis, axes=1)   # (out, in)
    bias = jnp.tensordot(bias_coef, b_basis, axes=1)       # (out,)
    return weight, bias


# ---------------------------------- main -------------------------------------

if __name__ == "__main__":
    def ref_linear(xx, w, b):
        return jnp.einsum("...k,nk->...n", xx, w) + b

    # ---- demo sizes (resident-W fast path): f32 and bf16-weight variants ----
    in_features, out_features, int_dim, seed = 32, 16, 4, 0
    weight, bias = make_silly_linear_params(in_features, out_features, int_dim, seed)
    x = jax.random.normal(jax.random.PRNGKey(0), (2, 8, in_features),
                          dtype=jnp.float32)
    y_ref = ref_linear(x, weight, bias)

    wt, b_pad, n_out = prepare_silly_linear(weight, bias)
    y = jax.block_until_ready(silly_linear(x, wt, b_pad, n_out))
    assert y.shape == (2, 8, out_features)
    assert jnp.allclose(y, y_ref, rtol=2e-2, atol=0.5), "f32 resident path mismatch"

    wt16, b_pad16, _ = prepare_silly_linear(weight, bias, compute_dtype=jnp.bfloat16)
    y16 = jax.block_until_ready(silly_linear(x, wt16, b_pad16, n_out))
    assert y16.shape == (2, 8, out_features)
    assert jnp.allclose(y16, y_ref, rtol=5e-2, atol=1.0), "bf16 resident path mismatch"

    # ---- force the 3-D tiled path with a non-256-aligned K (masked tail) ----
    in2, out2 = 320, 200
    weight2, bias2 = make_silly_linear_params(in2, out2, 6, 7)
    x2 = jax.random.normal(jax.random.PRNGKey(1), (3, 64, in2), dtype=jnp.float32)
    y2_ref = ref_linear(x2, weight2, bias2)

    wt2, b2_pad, n_out2 = prepare_silly_linear(weight2, bias2)
    y2 = jax.block_until_ready(silly_linear(x2, wt2, b2_pad, n_out2, force_tiled=True))
    assert y2.shape == (3, 64, out2)
    assert jnp.allclose(y2, y2_ref, rtol=2e-2, atol=0.5), "f32 tiled path mismatch"

    wt2_16, b2_pad16, _ = prepare_silly_linear(weight2, bias2,
                                               compute_dtype=jnp.bfloat16)
    y2_16 = jax.block_until_ready(
        silly_linear(x2, wt2_16, b2_pad16, n_out2, force_tiled=True))
    assert y2_16.shape == (3, 64, out2)
    assert jnp.allclose(y2_16, y2_ref, rtol=5e-2, atol=2.0), "bf16 tiled path mismatch"

    print("KERNEL_OK")
</pallas_src>

<mosaic_0001>
module attributes {stable_mosaic.version = 11 : i64} {
  func.func @_silly_linear_resident_kernel(%arg0: i32, %arg1: memref<16x32xf32, #tpu.memory_space<vmem>>, %arg2: memref<32x256xf32, #tpu.memory_space<vmem>>, %arg3: memref<1x256xf32, #tpu.memory_space<vmem>>, %arg4: memref<16x256xf32, #tpu.memory_space<vmem>>) attributes {dimension_semantics = [#tpu.dimension_semantics<parallel>], iteration_bounds = array<i64: 1>, scalar_prefetch = 0 : i64, scratch_operands = 0 : i64, tpu.core_type = #tpu.core_type<tc>, window_params = [{transform_indices = @transform_0, window_bounds = array<i64: 16, 32>}, {pipeline_mode = #tpu.pipeline_mode<synchronous>, transform_indices = @transform_1, window_bounds = array<i64: 32, 256>}, {pipeline_mode = #tpu.pipeline_mode<synchronous>, transform_indices = @transform_2, window_bounds = array<i64: 1, 256>}, {transform_indices = @transform_3, window_bounds = array<i64: 16, 256>}]} {
    %c0 = arith.constant 0 : index
    %c0_0 = arith.constant 0 : index
    %0 = vector.load %arg1[%c0, %c0_0] : memref<16x32xf32, #tpu.memory_space<vmem>>, vector<16x32xf32>
    %c0_1 = arith.constant 0 : index
    %c0_2 = arith.constant 0 : index
    %1 = vector.load %arg2[%c0_1, %c0_2] : memref<32x256xf32, #tpu.memory_space<vmem>>, vector<32x256xf32>
    %cst = arith.constant dense<0.000000e+00> : vector<16x256xf32>
    %2 = tpu.matmul %0, %1, %cst {dimension_numbers = #tpu.dot_dimension_numbers<[1], [0], [0], [1], [0, 0, 1, 1], [], []>} : vector<16x32xf32>, vector<32x256xf32>, vector<16x256xf32> -> vector<16x256xf32>
    %c0_3 = arith.constant 0 : index
    %c0_4 = arith.constant 0 : index
    %3 = vector.load %arg3[%c0_3, %c0_4] : memref<1x256xf32, #tpu.memory_space<vmem>>, vector<1x256xf32>
    %4 = vector.broadcast %3 : vector<1x256xf32> to vector<16x256xf32>
    %5 = arith.addf %2, %4 : vector<16x256xf32>
    %c0_5 = arith.constant 0 : index
    %c0_6 = arith.constant 0 : index
    %6 = vector.load %arg4[%c0_5, %c0_6] : memref<16x256xf32, #tpu.memory_space<vmem>>, vector<16x256xf32>
    tpu.vector_store %arg4[%c0_5, %c0_6], %5 {strides = array<i32>} : memref<16x256xf32, #tpu.memory_space<vmem>>, vector<16x256xf32>,
    return
  }
  func.func @transform_0(%arg0: i32) -> (i32, i32) {
    %c0_i32 = arith.constant 0 : i32
    %c0_i32_0 = arith.constant 0 : i32
    return %arg0, %c0_i32 : i32, i32
  }
  func.func @transform_1(%arg0: i32) -> (i32, i32) {
    %c0_i32 = arith.constant 0 : i32
    %c0_i32_0 = arith.constant 0 : i32
    %c0_i32_1 = arith.constant 0 : i32
    return %c0_i32, %c0_i32_0 : i32, i32
  }
  func.func @transform_2(%arg0: i32) -> (i32, i32) {
    %c0_i32 = arith.constant 0 : i32
    %c0_i32_0 = arith.constant 0 : i32
    %c0_i32_1 = arith.constant 0 : i32
    return %c0_i32, %c0_i32_0 : i32, i32
  }
  func.func @transform_3(%arg0: i32) -> (i32, i32) {
    %c0_i32 = arith.constant 0 : i32
    %c0_i32_0 = arith.constant 0 : i32
    return %arg0, %c0_i32 : i32, i32
  }
}

</mosaic_0001>

<llo_original>
// kernel: tpu_custom_call.1
$region0: #{tpu_custom_call.1}
  #allocation0 [shape = 'u32[]', space=smem, size = 0x4, offset = 0x4, fixed_abs, tag = 'smem constant byte address 0x4 - core index']
  #allocation1 [shape = 'u32[144,128]{1,0:T(1,128)}', space=vmem, size = 0x12000, scoped, tag = 'internal scratch']
  %s0 = inlined_call_operand.hbm [shape: f32[16,32], index: 0, kind: input, shape index: {}]
  %s1 = inlined_call_operand.hbm [shape: f32[32,256], index: 1, kind: input, shape index: {}]
  %s2 = inlined_call_operand.vmem [shape: f32[1,256], index: 2, kind: input, shape index: {}]
  %s3 = inlined_call_operand.hbm [shape: f32[16,256], index: 3, kind: output, shape index: {}]
  %s4 = sld [smem:[#allocation0]]
  $region30: #{tpu_custom_call.1} parent=0
    _
  %s6 = ssub.s32 1, %s4
  %s7 = scalar_select 0, %s6, %s4
  $region1: #{tpu_custom_call.1} parent=0
    #allocation2 [shape = 'u8[8192]{0}', space=vmem, size = 0x2000, scoped, tag = 'input window, operand 0, single buffered']
    #allocation3 [shape = 's32[1]{0}', space=sflag, size = 0x4, scoped, tag = 'scoped memory for tpu_custom_call.1']
    #allocation4 [shape = 's32[1]{0}', space=sflag, size = 0x4, scoped, tag = 'scoped memory for tpu_custom_call.1']
    #allocation5 [shape = 'u8[32768]{0}', space=vmem, size = 0x8000, scoped, tag = 'input window, operand 1, single buffered']
    #allocation6 [shape = 's32[1]{0}', space=sflag, size = 0x4, scoped, tag = 'scoped memory for tpu_custom_call.1']
    #allocation7 [shape = 'u8[16384]{0}', space=vmem, size = 0x4000, scoped, tag = 'output window, operand 0, single buffered']
    %8 = vsyncpa [#allocation3], 0
    %9 = vsyncpa [#allocation6], 0
    %10 = vsyncpa [#allocation4], 0
    // Predicated region
    $region2: #{tpu_custom_call.1} parent=1 // pred_check
      _
    $region3: #{tpu_custom_call.1} parent=1 // pred_check_branch
      %12 = sbr.rel (0) target = $region5
    $region4: #{tpu_custom_call.1} parent=1 // pred_region
      %s14 = ssub.s32 256, 256
      %15 = vsyncadd [#allocation3], %s14
      %s16 = sshll.u32 [#allocation2], 4
      %s17 = int_to_ptr.vmem [resolvable:$true] %s16
      %22 = dma.hbm_to_vmem [thread:$0]  %s0, 256, %s17, [#allocation3], 128, 128, 8
    $region5: #{tpu_custom_call.1} parent=1 // pred_fallthru
      _
    // Predicated region
    $region6: #{tpu_custom_call.1} parent=1 // pred_check
      _
    $region7: #{tpu_custom_call.1} parent=1 // pred_check_branch
      %24 = sbr.rel (0) target = $region9
    $region8: #{tpu_custom_call.1} parent=1 // pred_region
      %s26 = ssub.s32 1024, 1024
      %27 = vsyncadd [#allocation6], %s26
      %s28 = sshll.u32 [#allocation5], 4
      %s29 = int_to_ptr.vmem [resolvable:$true] %s28
      %34 = dma.hbm_to_vmem [thread:$0]  %s1, 1024, %s29, [#allocation6], 256, 256, 16
    $region9: #{tpu_custom_call.1} parent=1 // pred_fallthru
      _
    // Predicated region
    $region10: #{tpu_custom_call.1} parent=1 // pred_check
      _
    $region11: #{tpu_custom_call.1} parent=1 // pred_check_branch
      %36 = sbr.rel (0) target = $region13
    $region12: #{tpu_custom_call.1} parent=1 // pred_region
      _
    $region13: #{tpu_custom_call.1} parent=1 // pred_fallthru
      _
    // Predicated region
    $region14: #{tpu_custom_call.1} parent=1 // pred_check
      _
    $region15: #{tpu_custom_call.1} parent=1 // pred_check_branch
      %38 = sbr.rel (0) target = $region17
    $region16: #{tpu_custom_call.1} parent=1 // pred_region
      %39 = dma.done [#allocation3], 256
    $region17: #{tpu_custom_call.1} parent=1 // pred_fallthru
      _
    // Predicated region
    $region18: #{tpu_custom_call.1} parent=1 // pred_check
      _
    $region19: #{tpu_custom_call.1} parent=1 // pred_check_branch
      %41 = sbr.rel (0) target = $region21
    $region20: #{tpu_custom_call.1} parent=1 // pred_region
      %42 = dma.done [#allocation6], 1024
    $region21: #{tpu_custom_call.1} parent=1 // pred_fallthru
      _
    %v43 = vld [vmem:[#allocation2] sm:$0xff]
    %v44 = vld [vmem:[#allocation2 + $0x8] sm:$0xff]
    %v45 = vld [vmem:[#allocation5] sm:$0xff]
    %v46 = vld [vmem:[#allocation5 + $0x8] sm:$0xff]
    %v47 = vld [vmem:[#allocation5 + $0x10] sm:$0xff]
    %v48 = vld [vmem:[#allocation5 + $0x18] sm:$0xff]
    %v49 = vld [vmem:[#allocation5 + $0x20] sm:$0xff]
    %v50 = vld [vmem:[#allocation5 + $0x28] sm:$0xff]
    %v51 = vld [vmem:[#allocation5 + $0x30] sm:$0xff]
    %v52 = vld [vmem:[#allocation5 + $0x38] sm:$0xff]
    %v53 = vld [vmem:[%s2] sm:$0x3]
    %v55 = vlaneseq
    %v56 = vshrl.u32 %v55, 7
    %v57 = vsub.s32 0, %v56
    %v58 = vrot.slane %v53, %v57
    %v59 = vlaneseq
    %v60 = vshrl.u32 %v59, 7
    %v61 = vsub.s32 1, %v60
    %v62 = vrot.slane %v53, %v61
    %vm65 = vcmask 261120
    %v67 = vsel %vm65, %v43, 0
    %v70 = vsel %vm65, %v44, 0
    %72 = vmatprep.subr.mxu0 %v46
    %73 = vmatpush1.msra.mxu0 %v45
    %74 = vmatprep.subr.mxu0 %v48
    %75 = vmatpush1.msra.mxu0 %v47
    %76 = vmatprep.subr.mxu0 %v50
    %77 = vmatpush1.msra.mxu0 %v49
    %78 = vmatprep.subr.mxu0 %v52
    %79 = vmatpush1.msra.mxu0 %v51
    %80 = vmatprep.subr.mxu0 0.0
    %81 = vmatpush1.msra.mxu0 0.0
    %82 = vmatprep.subr.mxu0 0.0
    %83 = vmatpush1.msra.mxu0 0.0
    %84 = vmatprep.subr.mxu0 0.0
    %85 = vmatpush1.msra.mxu0 0.0
    %86 = vmatprep.subr.mxu0 0.0
    %87 = vmatpush1.msra.mxu0 0.0
    %88 = vmatprep.subr.mxu0 0.0
    %89 = vmatpush1.msra.mxu0 0.0
    %90 = vmatprep.subr.mxu0 0.0
    %91 = vmatpush1.msra.mxu0 0.0
    %92 = vmatprep.subr.mxu0 0.0
    %93 = vmatpush1.msra.mxu0 0.0
    %94 = vmatprep.subr.mxu0 0.0
    %95 = vmatpush1.msra.mxu0 0.0
    %96 = vmatprep.subr.mxu0 0.0
    %97 = vmatpush1.msra.mxu0 0.0
    %98 = vmatprep.subr.mxu0 0.0
    %99 = vmatpush1.msra.mxu0 0.0
    %100 = vmatprep.subr.mxu0 0.0
    %101 = vmatpush1.msra.mxu0 0.0
    %102 = vmatprep.subr.mxu0 0.0
    %103 = vmatpush1.msra.mxu0 0.0
    %104 = vmatprep.subr.mxu0 0.0
    %105 = vmatpush1.msra.mxu0 0.0
    %106 = vmatprep.subr.mxu0 0.0
    %107 = vmatpush1.msra.mxu0 0.0
    %108 = vmatprep.subr.mxu0 0.0
    %109 = vmatpush1.msra.mxu0 0.0
    %110 = vmatprep.subr.mxu0 0.0
    %111 = vmatpush1.msra.mxu0 0.0
    %112 = vmatprep.subr.mxu0 0.0
    %113 = vmatpush1.msra.mxu0 0.0
    %114 = vmatprep.subr.mxu0 0.0
    %115 = vmatpush1.msra.mxu0 0.0
    %116 = vmatprep.subr.mxu0 0.0
    %117 = vmatpush1.msra.mxu0 0.0
    %118 = vmatprep.subr.mxu0 0.0
    %119 = vmatpush1.msra.mxu0 0.0
    %120 = vmatprep.subr.mxu0 0.0
    %121 = vmatpush1.msra.mxu0 0.0
    %122 = vmatprep.subr.mxu0 0.0
    %123 = vmatpush1.msra.mxu0 0.0
    %124 = vmatprep.subr.mxu0 0.0
    %125 = vmatpush1.msra.mxu0 0.0
    %126 = vmatprep.subr.mxu0 0.0
    %127 = vmatpush1.msra.mxu0 0.0
    %128 = vmatprep.subr.mxu0 0.0
    %129 = vmatpush1.msra.mxu0 0.0
    %130 = vmatprep.subr.mxu0 0.0
    %131 = vmatpush1.msra.mxu0 0.0
    %132 = vmatprep.subr.mxu0 0.0
    %133 = vmatpush1.msra.mxu0 0.0
    %134 = vmatprep.subr.mxu0 0.0
    %135 = vmatpush1.msra.mxu0 0.0
    %136 = vmatprep.mubr.f32.mxu0 0.0
    %137 = vmatmul.mubr.f32.gmra.mrb[0].mxu0 %v67
    %v138 = vpop.f32.mrb[0].mxu0
    %v139 = vadd.f32 %v58, %v138
    %v140 = vpop.f32.mrb[0].mxu0
    %v141 = vadd.f32 %v62, %v140
    %142 = vmatprep.mubr.f32.mxu0 0.0
    %143 = vmatmul.mubr.f32.gmra.mrb[0].mxu0 %v70
    %v144 = vpop.f32.mrb[0].mxu0
    %v145 = vadd.f32 %v58, %v144
    %v146 = vpop.f32.mrb[0].mxu0
    %v147 = vadd.f32 %v62, %v146
    %148 = vdwg.mxu0
    %149 = vst [vmem:[#allocation7] sm:$0xff] %v139
    %150 = vst [vmem:[#allocation7 + $0x8] sm:$0xff] %v141
    %151 = vst [vmem:[#allocation7 + $0x10] sm:$0xff] %v145
    %152 = vst [vmem:[#allocation7 + $0x18] sm:$0xff] %v147
    // Predicated region
    $region22: #{tpu_custom_call.1} parent=1 // pred_check
      _
    $region23: #{tpu_custom_call.1} parent=1 // pred_check_branch
      %154 = sbr.rel (0) target = $region25
    $region24: #{tpu_custom_call.1} parent=1 // pred_region
      %s156 = ssub.s32 512, 512
      %157 = vsyncadd [#allocation4], %s156
      %s158 = sshll.u32 [#allocation7], 4
      %s159 = int_to_ptr.vmem [resolvable:$true] %s158
      %164 = dma.vmem_to_hbm [thread:$0]  %s159, 512, %s3, [#allocation4], 256, 256, 16
    $region25: #{tpu_custom_call.1} parent=1 // pred_fallthru
      _
    // Predicated region
    $region26: #{tpu_custom_call.1} parent=1 // pred_check
      _
    $region27: #{tpu_custom_call.1} parent=1 // pred_check_branch
      %166 = sbr.rel (0) target = $region29
    $region28: #{tpu_custom_call.1} parent=1 // pred_region
      %167 = dma.done [#allocation4], 512
    $region29: #{tpu_custom_call.1} parent=1 // pred_fallthru
      _
    %168 = vsyncpa [#allocation3], 1
    %169 = vsyncpa [#allocation6], 1
    %170 = vsyncpa [#allocation4], 1

</llo_original>
